<compile_context>
chip_gen: v7x
topology: tpu7x:2x2x1
jax: 0.10.0
libtpu: 0.0.40
codegen_flags: <defaults>
</compile_context>

<pallas_src>
import jax
import jax.numpy as jnp
from jax.experimental import pallas as pl
from jax.experimental.pallas import tpu as pltpu

_LANE = 128
_MAX_LANE_WIDTH = 2048
_DEFAULT_TILE_BYTES = 4 * 1024 * 1024   # ~4 MiB per block (per perf review)
_SMALL_FALLBACK_BYTES = 64 * 1024       # below this, plain jnp.tanh (XLA fuses it)


def _tanh_kernel(x_ref, o_ref):
    # Elementwise tanh on the whole VMEM tile (EUP transcendental slot).
    o_ref[...] = jnp.tanh(x_ref[...])


def _pick_lane_width(n_elems: int) -> int:
    """Widest multiple of 128 (<= 2048) that divides n_elems; 0 if none."""
    for w in range(_MAX_LANE_WIDTH, 0, -_LANE):
        if n_elems % w == 0:
            return w
    return 0


def model_tanh_forward(x: jax.Array, *, force_pallas: bool = False,
                       target_tile_bytes: int = _DEFAULT_TILE_BYTES) -> jax.Array:
    """Forward pass of ModelTanh: identity (empty Sequential) + tanh."""
    orig_shape = x.shape
    dtype = x.dtype
    n_elems = x.size
    itemsize = jnp.dtype(dtype).itemsize
    total_bytes = n_elems * itemsize

    lane_w = _pick_lane_width(n_elems)

    if lane_w == 0:
        # TODO(synk): ragged (non-multiple-of-128) sizes would need a masked
        # tail path in-kernel; fall back to XLA for correctness.
        return jnp.tanh(x)
    if (not force_pallas) and total_bytes < _SMALL_FALLBACK_BYTES:
        # Tiny activation (e.g. the module's nominal 1x3x32x32 = 12 KiB):
        # a pallas_call launch + DMA round trip dwarfs the work; let XLA fuse.
        return jnp.tanh(x)

    rows = n_elems // lane_w
    x2d = x.reshape(rows, lane_w)  # contiguous reshape: free

    # Sublane granularity for partial tiles: f32 -> 8, bf16 -> 16, int8 -> 32.
    sublane = max(8, 32 // itemsize)
    row_bytes = lane_w * itemsize

    if rows * row_bytes <= target_tile_bytes or rows <= sublane:
        tile_r = rows  # single full-extent block (always a legal block shape)
    else:
        tile_r = max(sublane, (target_tile_bytes // row_bytes) // sublane * sublane)
        tile_r = min(tile_r, rows)

    grid = (pl.cdiv(rows, tile_r),)
    tile_bytes = tile_r * row_bytes
    # 2 input + 2 output double-buffers = 4x tile, plus headroom; keep under
    # ~48 MiB so it fits v7x's 64 MiB/TC VMEM, and at least the scoped default.
    vmem_limit = int(min(48 << 20, max(16 << 20, 4 * tile_bytes + (2 << 20))))

    out2d = pl.pallas_call(
        _tanh_kernel,
        out_shape=jax.ShapeDtypeStruct((rows, lane_w), dtype),
        grid=grid,
        in_specs=[pl.BlockSpec((tile_r, lane_w), lambda i: (i, 0))],
        out_specs=pl.BlockSpec((tile_r, lane_w), lambda i: (i, 0)),
        compiler_params=pltpu.CompilerParams(
            dimension_semantics=("parallel",),
            vmem_limit_bytes=vmem_limit,
        ),
        cost_estimate=pl.CostEstimate(
            flops=0,
            transcendentals=n_elems,
            bytes_accessed=2 * total_bytes,
        ),
    )(x2d)

    return out2d.reshape(orig_shape)


if __name__ == "__main__":
    key = jax.random.PRNGKey(0)
    # Shape consistent with the module's example input: (1, 3, 32, 32) NCHW.
    x = jax.random.normal(key, (1, 3, 32, 32), dtype=jnp.float32)
    ref = jnp.tanh(x)  # reference computed BEFORE any kernel call

    # 1) Pallas path at the module's shape (forced, so the kernel really runs).
    out = model_tanh_forward(x, force_pallas=True)
    jax.block_until_ready(out)
    assert out.shape == x.shape and out.dtype == x.dtype
    assert jnp.allclose(out, ref, atol=1e-5, rtol=1e-5)

    # 2) Default path at this tiny size falls back to a bare jnp.tanh.
    out_fb = model_tanh_forward(x)
    jax.block_until_ready(out_fb)
    assert jnp.allclose(out_fb, ref, atol=1e-5, rtol=1e-5)

    # 3) Multi-block grid path (grid > 1, partial last block) at a still-small
    #    size by shrinking the tile target; exercises the pipelined tiling.
    x2 = jax.random.normal(jax.random.PRNGKey(1), (8, 3, 32, 32), jnp.float32)
    ref2 = jnp.tanh(x2)
    out2 = model_tanh_forward(x2, force_pallas=True, target_tile_bytes=64 * 1024)
    jax.block_until_ready(out2)
    assert jnp.allclose(out2, ref2, atol=1e-5, rtol=1e-5)

    print("KERNEL_OK")
</pallas_src>

<mosaic_0001>
module attributes {stable_mosaic.version = 11 : i64} {
  func.func @_tanh_kernel(%arg0: i32, %arg1: memref<2x1536xf32, #tpu.memory_space<vmem>>, %arg2: memref<2x1536xf32, #tpu.memory_space<vmem>>) attributes {dimension_semantics = [#tpu.dimension_semantics<parallel>], iteration_bounds = array<i64: 1>, scalar_prefetch = 0 : i64, scratch_operands = 0 : i64, tpu.core_type = #tpu.core_type<tc>, window_params = [{transform_indices = @transform_0, window_bounds = array<i64: 2, 1536>}, {transform_indices = @transform_1, window_bounds = array<i64: 2, 1536>}]} {
    %c0 = arith.constant 0 : index
    %c0_0 = arith.constant 0 : index
    %0 = vector.load %arg1[%c0, %c0_0] : memref<2x1536xf32, #tpu.memory_space<vmem>>, vector<2x1536xf32>
    %1 = math.tanh %0 : vector<2x1536xf32>
    %c0_1 = arith.constant 0 : index
    %c0_2 = arith.constant 0 : index
    %2 = vector.load %arg2[%c0_1, %c0_2] : memref<2x1536xf32, #tpu.memory_space<vmem>>, vector<2x1536xf32>
    tpu.vector_store %arg2[%c0_1, %c0_2], %1 {strides = array<i32>} : memref<2x1536xf32, #tpu.memory_space<vmem>>, vector<2x1536xf32>,
    return
  }
  func.func @transform_0(%arg0: i32) -> (i32, i32) {
    %c0_i32 = arith.constant 0 : i32
    %c0_i32_0 = arith.constant 0 : i32
    return %arg0, %c0_i32 : i32, i32
  }
  func.func @transform_1(%arg0: i32) -> (i32, i32) {
    %c0_i32 = arith.constant 0 : i32
    %c0_i32_0 = arith.constant 0 : i32
    return %arg0, %c0_i32 : i32, i32
  }
}

</mosaic_0001>

<llo_original>
// kernel: tpu_custom_call.1
$region0: #{tpu_custom_call.1}
  #allocation0 [shape = 'u32[]', space=smem, size = 0x4, offset = 0x4, fixed_abs, tag = 'smem constant byte address 0x4 - core index']
  #allocation1 [shape = 'u32[144,128]{1,0:T(1,128)}', space=vmem, size = 0x12000, scoped, tag = 'internal scratch']
  %s0 = inlined_call_operand.hbm [shape: f32[2,1536], index: 0, kind: input, shape index: {}]
  %s1 = inlined_call_operand.hbm [shape: f32[2,1536], index: 1, kind: output, shape index: {}]
  %s2 = sld [smem:[#allocation0]]
  $region18: #{tpu_custom_call.1} parent=0
    _
  %s4 = ssub.s32 1, %s2
  %s5 = scalar_select 0, %s4, %s2
  $region1: #{tpu_custom_call.1} parent=0
    #allocation2 [shape = 'u8[12288]{0}', space=vmem, size = 0x3000, scoped, tag = 'input window, operand 0, single buffered']
    #allocation3 [shape = 's32[1]{0}', space=sflag, size = 0x4, scoped, tag = 'scoped memory for tpu_custom_call.1']
    #allocation4 [shape = 's32[1]{0}', space=sflag, size = 0x4, scoped, tag = 'scoped memory for tpu_custom_call.1']
    #allocation5 [shape = 'u8[12288]{0}', space=vmem, size = 0x3000, scoped, tag = 'output window, operand 0, single buffered']
    %6 = vsyncpa [#allocation3], 0
    %7 = vsyncpa [#allocation4], 0
    // Predicated region
    $region2: #{tpu_custom_call.1} parent=1 // pred_check
      _
    $region3: #{tpu_custom_call.1} parent=1 // pred_check_branch
      %9 = sbr.rel (0) target = $region5
    $region4: #{tpu_custom_call.1} parent=1 // pred_region
      %s11 = ssub.s32 384, 384
      %12 = vsyncadd [#allocation3], %s11
      %s14 = sshll.u32 [#allocation2], 4
      %s15 = int_to_ptr.vmem [resolvable:$true] %s14
      %17 = dma.hbm_to_vmem [thread:$0]  %s0, 384, %s15, [#allocation3]
    $region5: #{tpu_custom_call.1} parent=1 // pred_fallthru
      _
    // Predicated region
    $region6: #{tpu_custom_call.1} parent=1 // pred_check
      _
    $region7: #{tpu_custom_call.1} parent=1 // pred_check_branch
      %19 = sbr.rel (0) target = $region9
    $region8: #{tpu_custom_call.1} parent=1 // pred_region
      %20 = dma.done [#allocation3], 384
    $region9: #{tpu_custom_call.1} parent=1 // pred_fallthru
      _
    %v21 = vld [vmem:[#allocation2] sm:$0xff]
    %v22 = vld [vmem:[#allocation2 + $0x8] sm:$0xff]
    %v23 = vld [vmem:[#allocation2 + $0x10] sm:$0xff]
    %v24 = vtanh.pop %v21
    %v25 = vtanh.pop %v22
    %v26 = vtanh.pop %v23
    %27 = vst [vmem:[#allocation5] sm:$0xff] %v24
    %28 = vst [vmem:[#allocation5 + $0x8] sm:$0xff] %v25
    %29 = vst [vmem:[#allocation5 + $0x10] sm:$0xff] %v26
    // Predicated region
    $region10: #{tpu_custom_call.1} parent=1 // pred_check
      _
    $region11: #{tpu_custom_call.1} parent=1 // pred_check_branch
      %31 = sbr.rel (0) target = $region13
    $region12: #{tpu_custom_call.1} parent=1 // pred_region
      %s33 = ssub.s32 384, 384
      %34 = vsyncadd [#allocation4], %s33
      %s36 = sshll.u32 [#allocation5], 4
      %s37 = int_to_ptr.vmem [resolvable:$true] %s36
      %39 = dma.vmem_to_hbm [thread:$0]  %s37, 384, %s1, [#allocation4]
    $region13: #{tpu_custom_call.1} parent=1 // pred_fallthru
      _
    // Predicated region
    $region14: #{tpu_custom_call.1} parent=1 // pred_check
      _
    $region15: #{tpu_custom_call.1} parent=1 // pred_check_branch
      %41 = sbr.rel (0) target = $region17
    $region16: #{tpu_custom_call.1} parent=1 // pred_region
      %42 = dma.done [#allocation4], 384
    $region17: #{tpu_custom_call.1} parent=1 // pred_fallthru
      _
    %43 = vsyncpa [#allocation3], 1
    %44 = vsyncpa [#allocation4], 1

</llo_original>
